<compile_context>
chip_gen: v6e
topology: v6e:2x2x1
jax: 0.10.0
libtpu: 0.0.40
codegen_flags: <defaults>
</compile_context>

<pallas_src>
import math

import jax
import jax.numpy as jnp
from jax.experimental import pallas as pl
from jax.experimental.pallas import tpu as pltpu


def _transpose_kernel(x_ref, o_ref):
    # x_ref: (C, TN) slab of one batch element; o_ref: (TN, C).
    o_ref[...] = jnp.transpose(x_ref[...], (1, 0))


def _transpose_pack_kernel(x_ref, o_ref):
    # x_ref: (C, TN); o_ref: (TN // k, k * C), lane-dense packing with
    #   o[q, j*C + c] == x[c, q*k + j].
    # A row-major reshape of the transposed tile gives exactly that ordering.
    o_ref[...] = jnp.transpose(x_ref[...], (1, 0)).reshape(o_ref.shape)


def _choose_token_tile(n, c, itemsize):
    """Largest 128-aligned divisor of n whose (c, tn) tile is ~<= 1 MiB."""
    target_bytes = 1 << 20  # per buffer; x2 double-buffer x2 (in+out) ~= 4 MiB
    cap = max(1, target_bytes // max(1, c * itemsize))
    if n <= cap:
        return n
    tn = (cap // 128) * 128
    while tn >= 128:
        if n % tn == 0:
            return tn
        tn -= 128
    # No 128-aligned divisor; fall back to the largest divisor <= cap.
    for tn in range(min(n, cap), 0, -1):
        if n % tn == 0:
            return tn
    return n


def _permute_021_direct(x, tn):
    B, C, N = x.shape
    return pl.pallas_call(
        _transpose_kernel,
        out_shape=jax.ShapeDtypeStruct((B, N, C), x.dtype),
        grid=(B, N // tn),
        in_specs=[pl.BlockSpec((None, C, tn), lambda b, n: (b, 0, n))],
        out_specs=pl.BlockSpec((None, tn, C), lambda b, n: (b, n, 0)),
        compiler_params=pltpu.CompilerParams(
            dimension_semantics=("parallel", "parallel"),
        ),
    )(x)


def _permute_021_lane_dense(x, tn, k):
    B, C, N = x.shape
    y_packed = pl.pallas_call(
        _transpose_pack_kernel,
        out_shape=jax.ShapeDtypeStruct((B, N // k, k * C), x.dtype),
        grid=(B, N // tn),
        in_specs=[pl.BlockSpec((None, C, tn), lambda b, n: (b, 0, n))],
        out_specs=pl.BlockSpec((None, tn // k, k * C), lambda b, n: (b, n, 0)),
        compiler_params=pltpu.CompilerParams(
            dimension_semantics=("parallel", "parallel"),
        ),
    )(x)
    # Contiguous row-major reshape back to the permuted layout (free in XLA).
    return y_packed.reshape(B, N, C)


def permute_021(x: jax.Array, tn: int | None = None) -> jax.Array:
    """Pallas implementation of torch.ops.aten.permute.default(x, [0, 2, 1])."""
    B, C, N = x.shape
    itemsize = jnp.dtype(x.dtype).itemsize
    if tn is None:
        tn = _choose_token_tile(N, C, itemsize)
    if N % tn != 0:
        raise ValueError(f"token tile {tn} must divide N={N}")

    # Lane packing factor: smallest k with (k * C) % 128 == 0.
    k = 128 // math.gcd(C, 128)

    tracer_cls = getattr(jax.core, "Tracer", ())
    is_eager = not isinstance(x, tracer_cls)

    if k > 1 and tn % k == 0 and is_eager:
        try:
            # block_until_ready inside the try so any Mosaic lowering /
            # runtime rejection of the in-kernel relayout is caught here.
            y = jax.block_until_ready(_permute_021_lane_dense(x, tn, k))
            return y
        except Exception:
            pass  # fall back to the direct (lane-sparse store) layout
    return _permute_021_direct(x, tn)


if __name__ == "__main__":
    k0, k1, k2 = jax.random.split(jax.random.PRNGKey(0), 3)

    # Case 1: GLPN-like early stage (C < 128 -> lane-dense output packing),
    # explicit tn=256 so the 2-D grid / index maps are exercised (4 token tiles).
    B, C, N = 2, 16, 1024
    x1 = jax.random.normal(k0, (B, C, N), dtype=jnp.float32)
    y1 = jax.block_until_ready(permute_021(x1, tn=256))
    assert y1.shape == (B, N, C), y1.shape
    assert y1.dtype == x1.dtype
    assert bool(jnp.array_equal(y1, jnp.transpose(x1, (0, 2, 1)))), "case 1 mismatch"

    # Case 2: C = 128 (already lane-dense) -> direct path, 2 token tiles.
    B2, C2, N2 = 2, 128, 512
    x2 = jax.random.normal(k1, (B2, C2, N2), dtype=jnp.float32)
    y2 = jax.block_until_ready(permute_021(x2, tn=256))
    assert y2.shape == (B2, N2, C2), y2.shape
    assert y2.dtype == x2.dtype
    assert bool(jnp.array_equal(y2, jnp.transpose(x2, (0, 2, 1)))), "case 2 mismatch"

    # Case 3: automatic tile selection (single token tile) on a mid-stage shape.
    B3, C3, N3 = 2, 64, 256
    x3 = jax.random.normal(k2, (B3, C3, N3), dtype=jnp.float32)
    y3 = jax.block_until_ready(permute_021(x3))
    assert bool(jnp.array_equal(y3, jnp.transpose(x3, (0, 2, 1)))), "case 3 mismatch"

    print("KERNEL_OK")
</pallas_src>

<mosaic_0001>
module attributes {stable_mosaic.version = 11 : i64} {
  func.func @_transpose_pack_kernel(%arg0: i32, %arg1: i32, %arg2: memref<1x16x256xf32, #tpu.memory_space<vmem>>, %arg3: memref<1x32x128xf32, #tpu.memory_space<vmem>>) attributes {dimension_semantics = [#tpu.dimension_semantics<parallel>, #tpu.dimension_semantics<parallel>], iteration_bounds = array<i64: 2, 4>, scalar_prefetch = 0 : i64, scratch_operands = 0 : i64, tpu.core_type = #tpu.core_type<tc>, window_params = [{transform_indices = @transform_0, window_bounds = array<i64: 1, 16, 256>}, {transform_indices = @transform_1, window_bounds = array<i64: 1, 32, 128>}]} {
    %c0 = arith.constant 0 : index
    %c0_0 = arith.constant 0 : index
    %c0_1 = arith.constant 0 : index
    %0 = vector.load %arg2[%c0, %c0_0, %c0_1] : memref<1x16x256xf32, #tpu.memory_space<vmem>>, vector<1x16x256xf32>
    %1 = vector.shape_cast %0 : vector<1x16x256xf32> to vector<16x256xf32>
    %2 = tpu.transpose %1, [1, 0] : vector<16x256xf32> -> vector<256x16xf32>
    %3 = vector.shape_cast %2 : vector<256x16xf32> to vector<32x128xf32>
    %c0_2 = arith.constant 0 : index
    %c0_3 = arith.constant 0 : index
    %c0_4 = arith.constant 0 : index
    %4 = vector.load %arg3[%c0_2, %c0_3, %c0_4] : memref<1x32x128xf32, #tpu.memory_space<vmem>>, vector<1x32x128xf32>
    %5 = vector.shape_cast %4 : vector<1x32x128xf32> to vector<32x128xf32>
    %6 = vector.shape_cast %3 : vector<32x128xf32> to vector<1x32x128xf32>
    tpu.vector_store %arg3[%c0_2, %c0_3, %c0_4], %6 {strides = array<i32>} : memref<1x32x128xf32, #tpu.memory_space<vmem>>, vector<1x32x128xf32>,
    return
  }
  func.func @transform_0(%arg0: i32, %arg1: i32) -> (i32, i32, i32) {
    %c0_i32 = arith.constant 0 : i32
    %c0_i32_0 = arith.constant 0 : i32
    return %arg0, %c0_i32, %arg1 : i32, i32, i32
  }
  func.func @transform_1(%arg0: i32, %arg1: i32) -> (i32, i32, i32) {
    %c0_i32 = arith.constant 0 : i32
    %c0_i32_0 = arith.constant 0 : i32
    return %arg0, %arg1, %c0_i32 : i32, i32, i32
  }
}

module attributes {stable_mosaic.version = 11 : i64} {
  func.func @_transpose_kernel(%arg0: i32, %arg1: i32, %arg2: memref<1x16x256xf32, #tpu.memory_space<vmem>>, %arg3: memref<1x256x16xf32, #tpu.memory_space<vmem>>) attributes {dimension_semantics = [#tpu.dimension_semantics<parallel>, #tpu.dimension_semantics<parallel>], iteration_bounds = array<i64: 2, 4>, scalar_prefetch = 0 : i64, scratch_operands = 0 : i64, tpu.core_type = #tpu.core_type<tc>, window_params = [{transform_indices = @transform_0, window_bounds = array<i64: 1, 16, 256>}, {transform_indices = @transform_1, window_bounds = array<i64: 1, 256, 16>}]} {
    %c0 = arith.constant 0 : index
    %c0_0 = arith.constant 0 : index
    %c0_1 = arith.constant 0 : index
    %0 = vector.load %arg2[%c0, %c0_0, %c0_1] : memref<1x16x256xf32, #tpu.memory_space<vmem>>, vector<1x16x256xf32>
    %1 = vector.shape_cast %0 : vector<1x16x256xf32> to vector<16x256xf32>
    %2 = tpu.transpose %1, [1, 0] : vector<16x256xf32> -> vector<256x16xf32>
    %c0_2 = arith.constant 0 : index
    %c0_3 = arith.constant 0 : index
    %c0_4 = arith.constant 0 : index
    %3 = vector.load %arg3[%c0_2, %c0_3, %c0_4] : memref<1x256x16xf32, #tpu.memory_space<vmem>>, vector<1x256x16xf32>
    %4 = vector.shape_cast %3 : vector<1x256x16xf32> to vector<256x16xf32>
    %5 = vector.shape_cast %2 : vector<256x16xf32> to vector<1x256x16xf32>
    tpu.vector_store %arg3[%c0_2, %c0_3, %c0_4], %5 {strides = array<i32>} : memref<1x256x16xf32, #tpu.memory_space<vmem>>, vector<1x256x16xf32>,
    return
  }
  func.func @transform_0(%arg0: i32, %arg1: i32) -> (i32, i32, i32) {
    %c0_i32 = arith.constant 0 : i32
    %c0_i32_0 = arith.constant 0 : i32
    return %arg0, %c0_i32, %arg1 : i32, i32, i32
  }
  func.func @transform_1(%arg0: i32, %arg1: i32) -> (i32, i32, i32) {
    %c0_i32 = arith.constant 0 : i32
    %c0_i32_0 = arith.constant 0 : i32
    return %arg0, %arg1, %c0_i32 : i32, i32, i32
  }
}

</mosaic_0001>

<llo_original>
// kernel: tpu_custom_call.1
$region0: #{tpu_custom_call.1}
  #allocation0 [shape = 'u32[]', space=smem, size = 0x4, offset = 0x4, fixed_abs, tag = 'smem constant byte address 0x4 - core index']
  #allocation1 [shape = 'u32[144,128]{1,0:T(1,128)}', space=vmem, size = 0x12000, scoped, tag = 'internal scratch']
  %s0 = inlined_call_operand.hbm [shape: f32[2,16,1024], index: 0, kind: input, shape index: {}]
  %s1 = inlined_call_operand.vmem [shape: f32[2,1024,16], index: 1, kind: output, shape index: {}]
  %s2 = sld [smem:[#allocation0]]
  $region41: #{tpu_custom_call.1} parent=0
    _
  %s4 = ssub.s32 1, %s2
  %s5 = scalar_select 0, %s4, %s2
  $region1: #{tpu_custom_call.1} parent=0
    #allocation2 [shape = 'u8[32768]{0}', space=vmem, size = 0x8000, scoped, tag = 'input window, operand 0']
    #allocation3 [shape = 's32[2]{0}', space=sflag, size = 0x8, scoped, tag = 'scoped memory for tpu_custom_call.1']
    %6 = vsyncpa [#allocation3], 0
    %s7 = scalar_lea.sflag [#allocation3], 1
    %8 = vsyncpa %s7, 0
    loop: start=0, step=1, limit=10
    $region2: #{tpu_custom_call.1} parent=1 // loop_pre_header
      _
    $region3: #{tpu_custom_call.1} parent=1 // loop_header
      %s10 = sphi 0, %s14
      %p11 = scmp.ge.s32.totalorder %s10, 10
      %s17 = sphi 0, %s29
      %s18 = sphi 0, %s25
      %s19 = sphi 0, %s17
      %s20 = sphi 0, %s18
      %s21 = sphi 0, %s19
      %s22 = sphi 0, %s20
      %s34 = sphi 0, %s36
      %s37 = sphi 0, %s34
      %s38 = sphi 0, %s37
      %s54 = sphi 0, %s38
      %s62 = sphi 0, %s64
      %s65 = sphi 0, %s62
      %s66 = sphi 0, %s65
      %s82 = sphi 0, %s66
    $region4: #{tpu_custom_call.1} parent=1 // loop_header_branch
      %13 = sbr.rel (%p11) target = $region8
    $region5: #{tpu_custom_call.1} parent=1 // loop_body
      %s15 = ssub.s32 %s10, 1
      %s16 = ssub.s32 %s10, 2
      %s23 = sadd.s32 1, %s18
      %p24 = scmp.ge.s32.totalorder %s23, 4
      %s25 = scalar_select %p24, 0, %s23
      %s26 = sadd.s32 1, %s17
      %s27 = scalar_select %p24, %s26, %s17
      %p28 = scmp.ge.s32.totalorder %s27, 2
      %s29 = scalar_select %p28, 0, %s27
      %s30 = ssub.s32 %s17, %s29
      %s31 = ssub.s32 %s18, %s25
      %s32 = sor.u32 %s30, %s31
      %p33 = scmp.eq.s32.totalorder %s32, 0
      %s35 = sadd.s32 %s34, 1
      %s36 = scalar_select %p33, %s34, %s35
      %p39 = pneg %p33
      %p40 = scmp.eq.s32.totalorder %s10, 7
      %p41 = por %p39, %p40
      %p42 = scmp.ne.s32.totalorder %s34, %s37
      %p43 = scmp.eq.s32.totalorder %s10, 0
      %p44 = por %p42, %p43
      %p45 = scmp.ne.s32.totalorder %s34, %s37
      %p46 = scmp.eq.s32.totalorder %s15, 7
      %p47 = por %p45, %p46
      %p48 = scmp.ne.s32.totalorder %s37, %s38
      %p49 = scmp.eq.s32.totalorder %s15, 0
      %p50 = por %p48, %p49
      %p51 = scmp.ne.s32.totalorder %s37, %s38
      %p52 = scmp.eq.s32.totalorder %s16, 7
      %p53 = por %p51, %p52
      %p55 = scmp.ne.s32.totalorder %s38, %s54
      %p56 = scmp.eq.s32.totalorder %s16, 0
      %p57 = por %p55, %p56
      %s58 = ssub.s32 %s17, %s29
      %s59 = ssub.s32 %s18, %s25
      %s60 = sor.u32 %s58, %s59
      %p61 = scmp.eq.s32.totalorder %s60, 0
      %s63 = sadd.s32 %s62, 1
      %s64 = scalar_select %p61, %s62, %s63
      %p67 = pneg %p61
      %p68 = scmp.eq.s32.totalorder %s10, 7
      %p69 = por %p67, %p68
      %p70 = scmp.ne.s32.totalorder %s62, %s65
      %p71 = scmp.eq.s32.totalorder %s10, 0
      %p72 = por %p70, %p71
      %p73 = scmp.ne.s32.totalorder %s62, %s65
      %p74 = scmp.eq.s32.totalorder %s15, 7
      %p75 = por %p73, %p74
      %p76 = scmp.ne.s32.totalorder %s65, %s66
      %p77 = scmp.eq.s32.totalorder %s15, 0
      %p78 = por %p76, %p77
      %p79 = scmp.ne.s32.totalorder %s65, %s66
      %p80 = scmp.eq.s32.totalorder %s16, 7
      %p81 = por %p79, %p80
      %p83 = scmp.ne.s32.totalorder %s66, %s82
      %p84 = scmp.eq.s32.totalorder %s16, 0
      %p85 = por %p83, %p84
      %p86 = scmp.le.s32.totalorder 1, %s10
      %p87 = scmp.lt.s32.totalorder %s10, 9
      %p88 = pnand %p86, %p87
      %p89 = pneg %p88
      // Predicated region
      $region9: #{tpu_custom_call.1} parent=5 // pred_check
        _
      $region10: #{tpu_custom_call.1} parent=5 // pred_check_branch
        %91 = sbr.rel (%p88) target = $region12
      $region11: #{tpu_custom_call.1} parent=5 // pred_region
        %s92 = ssub.s32 %s10, 1
      $region12: #{tpu_custom_call.1} parent=5 // pred_fallthru
        _
      %p93 = scmp.lt.s32.totalorder %s10, 8
      // Predicated region
      $region13: #{tpu_custom_call.1} parent=5 // pred_check
        %p94 = pneg %p93
      $region14: #{tpu_custom_call.1} parent=5 // pred_check_branch
        %96 = sbr.rel (%p94) target = $region16
      $region15: #{tpu_custom_call.1} parent=5 // pred_region
        // Predicated region
        $region17: #{tpu_custom_call.1} parent=15 // pred_check
          %p97 = pneg %p44
        $region18: #{tpu_custom_call.1} parent=15 // pred_check_branch
          %99 = sbr.rel (%p97) target = $region20
        $region19: #{tpu_custom_call.1} parent=15 // pred_region
          %s100 = sand.u32 %s34, 1
          %s101 = scalar_lea.sflag [#allocation3], %s100
          %s102 = sand.u32 %s34, 1
          %s103 = smul.addr %s102, 32
          %s104 = scalar_lea.vmem [#allocation2], %s103
          %s105 = smul.u32 2, %s18
          %s107 = ssub.s32 512, 512
          %108 = vsyncadd %s101, %s107
          %s109 = smul.addr %s17, 16
          %s110 = sadd.s32 %s105, %s109
          %s111 = smul.addr %s110, 128
          %s112 = scalar_lea.hbm %s0, %s111
          %s113 = sshll.u32 %s104, 4
          %s114 = int_to_ptr.vmem [resolvable:$true] %s113
          %119 = dma.hbm_to_vmem [thread:$0]  %s112, 512, %s114, %s101, 1024, 256, 16
        $region20: #{tpu_custom_call.1} parent=15 // pred_fallthru
          _
      $region16: #{tpu_custom_call.1} parent=5 // pred_fallthru
        _
      %p120 = scmp.le.s32.totalorder 1, %s10
      %p121 = scmp.lt.s32.totalorder %s10, 9
      %p122 = pnand %p120, %p121
      %p123 = pneg %p122
      // Predicated region
      $region21: #{tpu_custom_call.1} parent=5 // pred_check
        _
      $region22: #{tpu_custom_call.1} parent=5 // pred_check_branch
        %125 = sbr.rel (%p122) target = $region24
      $region23: #{tpu_custom_call.1} parent=5 // pred_region
        %s126 = ssub.s32 %s10, 1
        %s127 = sand.u32 %s37, 1
        %s128 = scalar_lea.sflag [#allocation3], %s127
        %s129 = sand.u32 %s37, 1
        %s130 = smul.addr %s129, 32
        %s131 = scalar_lea.vmem [#allocation2], %s130
        // Predicated region
        $region25: #{tpu_custom_call.1} parent=23 // pred_check
          %p132 = pneg %p50
        $region26: #{tpu_custom_call.1} parent=23 // pred_check_branch
          %134 = sbr.rel (%p132) target = $region28
        $region27: #{tpu_custom_call.1} parent=23 // pred_region
          %135 = dma.done %s128, 512
        $region28: #{tpu_custom_call.1} parent=23 // pred_fallthru
          _
        %s136 = sand.u32 %s37, 1
        %s137 = scalar_lea.sflag [#allocation3], %s136
        %s138 = sand.u32 %s37, 1
        %s139 = smul.addr %s138, 32
        %s140 = scalar_lea.vmem [#allocation2], %s139
        %p141 = pneg %p50
        %p142 = pneg %p47
        %p143 = pneg %p78
        %p144 = pneg %p75
        %s145 = smul.u32 32, %s20
        %p146 = scmp.lt.s32.totalorder %s19, 1
        %s147 = scalar_select %p146, %s19, 1
        %p148 = scmp.lt.s32.totalorder %s145, 127
        %s149 = scalar_select %p148, %s145, 127
        %s150 = smul.addr %s147, 128
        %s151 = sadd.s32 %s149, %s150
        %s152 = smul.addr %s151, 8
        %s153 = scalar_lea.vmem %s1, %s152
        %s154 = smul.u32 2, %s20
        %s155 = smul.u32 32, %s20
        %p156 = scmp.lt.s32.totalorder %s19, 1
        %s157 = scalar_select %p156, %s19, 1
        %p158 = scmp.lt.s32.totalorder %s155, 127
        %s159 = scalar_select %p158, %s155, 127
        %s160 = smul.addr %s157, 128
        %s161 = sadd.s32 %s159, %s160
        %s162 = smul.addr %s161, 8
        %s163 = scalar_lea.vmem %s1, %s162
        %s164 = smul.u32 32, %s20
        %v165 = vld [vmem:[%s131] sm:$0xff]
        %v166 = vld [vmem:[%s131 + $0x8] sm:$0xff]
        %v167 = vld [vmem:[%s131 + $0x10] sm:$0xff]
        %v168 = vld [vmem:[%s131 + $0x18] sm:$0xff]
        %169 = vxpose.xlu0.b32.start [1/16] %v165, 128
        %170 = vxpose.xlu0.b32.cont [2/16] %v167, 128
        %171 = vxpose.xlu0.b32.cont [3/16] 0.0, 128
        %172 = vxpose.xlu0.b32.cont [4/16] 0.0, 128
        %173 = vxpose.xlu0.b32.cont [5/16] 0.0, 128
        %174 = vxpose.xlu0.b32.cont [6/16] 0.0, 128
        %175 = vxpose.xlu0.b32.cont [7/16] 0.0, 128
        %176 = vxpose.xlu0.b32.cont [8/16] 0.0, 128
        %177 = vxpose.xlu0.b32.cont [9/16] 0.0, 128
        %178 = vxpose.xlu0.b32.cont [10/16] 0.0, 128
        %179 = vxpose.xlu0.b32.cont [11/16] 0.0, 128
        %180 = vxpose.xlu0.b32.cont [12/16] 0.0, 128
        %181 = vxpose.xlu0.b32.cont [13/16] 0.0, 128
        %182 = vxpose.xlu0.b32.cont [14/16] 0.0, 128
        %183 = vxpose.xlu0.b32.cont [15/16] 0.0, 128
        %184 = vxpose.xlu0.b32.end [16/16] 0.0, 128
        %v185 = vpop.trf.xlu0
        %v186 = vpop.trf.xlu0
        %v187 = vpop.trf.xlu0
        %v188 = vpop.trf.xlu0
        %v189 = vpop.trf.xlu0
        %v190 = vpop.trf.xlu0
        %v191 = vpop.trf.xlu0
        %v192 = vpop.trf.xlu0
        %v193 = vpop.trf.xlu0
        %v194 = vpop.trf.xlu0
        %v195 = vpop.trf.xlu0
        %v196 = vpop.trf.xlu0
        %v197 = vpop.trf.xlu0
        %v198 = vpop.trf.xlu0
        %v199 = vpop.trf.xlu0
        %v200 = vpop.trf.xlu0
        %201 = vxpose.xlu0.b32.start [1/16] %v166, 128
        %202 = vxpose.xlu0.b32.cont [2/16] %v168, 128
        %203 = vxpose.xlu0.b32.cont [3/16] 0.0, 128
        %204 = vxpose.xlu0.b32.cont [4/16] 0.0, 128
        %205 = vxpose.xlu0.b32.cont [5/16] 0.0, 128
        %206 = vxpose.xlu0.b32.cont [6/16] 0.0, 128
        %207 = vxpose.xlu0.b32.cont [7/16] 0.0, 128
        %208 = vxpose.xlu0.b32.cont [8/16] 0.0, 128
        %209 = vxpose.xlu0.b32.cont [9/16] 0.0, 128
        %210 = vxpose.xlu0.b32.cont [10/16] 0.0, 128
        %211 = vxpose.xlu0.b32.cont [11/16] 0.0, 128
        %212 = vxpose.xlu0.b32.cont [12/16] 0.0, 128
        %213 = vxpose.xlu0.b32.cont [13/16] 0.0, 128
        %214 = vxpose.xlu0.b32.cont [14/16] 0.0, 128
        %215 = vxpose.xlu0.b32.cont [15/16] 0.0, 128
        %216 = vxpose.xlu0.b32.end [16/16] 0.0, 128
        %v217 = vpop.trf.xlu0
        %v218 = vpop.trf.xlu0
        %v219 = vpop.trf.xlu0
        %v220 = vpop.trf.xlu0
        %v221 = vpop.trf.xlu0
        %v222 = vpop.trf.xlu0
        %v223 = vpop.trf.xlu0
        %v224 = vpop.trf.xlu0
        %v225 = vpop.trf.xlu0
        %v226 = vpop.trf.xlu0
        %v227 = vpop.trf.xlu0
        %v228 = vpop.trf.xlu0
        %v229 = vpop.trf.xlu0
        %v230 = vpop.trf.xlu0
        %v231 = vpop.trf.xlu0
        %v232 = vpop.trf.xlu0
        %vm233 = vcmask 130048
        %234 = vst.msk [vmem:[%s163] sm:$0xff] %vm233, %v185
        %235 = vst.msk [vmem:[%s163 + $0x8] sm:$0xff] %vm233, %v186
        %236 = vst.msk [vmem:[%s163 + $0x10] sm:$0xff] %vm233, %v187
        %237 = vst.msk [vmem:[%s163 + $0x18] sm:$0xff] %vm233, %v188
        %238 = vst.msk [vmem:[%s163 + $0x20] sm:$0xff] %vm233, %v189
        %239 = vst.msk [vmem:[%s163 + $0x28] sm:$0xff] %vm233, %v190
        %240 = vst.msk [vmem:[%s163 + $0x30] sm:$0xff] %vm233, %v191
        %241 = vst.msk [vmem:[%s163 + $0x38] sm:$0xff] %vm233, %v192
        %242 = vst.msk [vmem:[%s163 + $0x40] sm:$0xff] %vm233, %v193
        %243 = vst.msk [vmem:[%s163 + $0x48] sm:$0xff] %vm233, %v194
        %244 = vst.msk [vmem:[%s163 + $0x50] sm:$0xff] %vm233, %v195
        %245 = vst.msk [vmem:[%s163 + $0x58] sm:$0xff] %vm233, %v196
        %246 = vst.msk [vmem:[%s163 + $0x60] sm:$0xff] %vm233, %v197
        %247 = vst.msk [vmem:[%s163 + $0x68] sm:$0xff] %vm233, %v198
        %248 = vst.msk [vmem:[%s163 + $0x70] sm:$0xff] %vm233, %v199
        %249 = vst.msk [vmem:[%s163 + $0x78] sm:$0xff] %vm233, %v200
        %250 = vst.msk [vmem:[%s163 + $0x80] sm:$0xff] %vm233, %v217
        %251 = vst.msk [vmem:[%s163 + $0x88] sm:$0xff] %vm233, %v218
        %252 = vst.msk [vmem:[%s163 + $0x90] sm:$0xff] %vm233, %v219
        %253 = vst.msk [vmem:[%s163 + $0x98] sm:$0xff] %vm233, %v220
        %254 = vst.msk [vmem:[%s163 + $0xa0] sm:$0xff] %vm233, %v221
        %255 = vst.msk [vmem:[%s163 + $0xa8] sm:$0xff] %vm233, %v222
        %256 = vst.msk [vmem:[%s163 + $0xb0] sm:$0xff] %vm233, %v223
        %257 = vst.msk [vmem:[%s163 + $0xb8] sm:$0xff] %vm233, %v224
        %258 = vst.msk [vmem:[%s163 + $0xc0] sm:$0xff] %vm233, %v225
        %259 = vst.msk [vmem:[%s163 + $0xc8] sm:$0xff] %vm233, %v226
        %260 = vst.msk [vmem:[%s163 + $0xd0] sm:$0xff] %vm233, %v227
        %261 = vst.msk [vmem:[%s163 + $0xd8] sm:$0xff] %vm233, %v228
        %262 = vst.msk [vmem:[%s163 + $0xe0] sm:$0xff] %vm233, %v229
        %263 = vst.msk [vmem:[%s163 + $0xe8] sm:$0xff] %vm233, %v230
        %264 = vst.msk [vmem:[%s163 + $0xf0] sm:$0xff] %vm233, %v231
        %265 = vst.msk [vmem:[%s163 + $0xf8] sm:$0xff] %vm233, %v232
        %s266 = smul.u32 32, %s20
        %p267 = scmp.lt.s32.totalorder %s19, 1
        %s268 = scalar_select %p267, %s19, 1
        %p269 = scmp.lt.s32.totalorder %s266, 127
        %s270 = scalar_select %p269, %s266, 127
        %s271 = smul.addr %s268, 128
        %s272 = sadd.s32 %s270, %s271
        %s273 = smul.addr %s272, 8
        %s274 = scalar_lea.vmem %s1, %s273
        // Predicated region
        $region29: #{tpu_custom_call.1} parent=23 // pred_check
          %p275 = pneg %p75
        $region30: #{tpu_custom_call.1} parent=23 // pred_check_branch
          %277 = sbr.rel (%p275) target = $region32
        $region31: #{tpu_custom_call.1} parent=23 // pred_region
          %s278 = smul.u32 32, %s20
        $region32: #{tpu_custom_call.1} parent=23 // pred_fallthru
          _
      $region24: #{tpu_custom_call.1} parent=5 // pred_fallthru
        _
      %p279 = scmp.le.s32.totalorder 2, %s10
      // Predicated region
      $region33: #{tpu_custom_call.1} parent=5 // pred_check
        %p280 = pneg %p279
      $region34: #{tpu_custom_call.1} parent=5 // pred_check_branch
        %282 = sbr.rel (%p280) target = $region36
      $region35: #{tpu_custom_call.1} parent=5 // pred_region
        %s283 = ssub.s32 %s10, 2
        // Predicated region
        $region37: #{tpu_custom_call.1} parent=35 // pred_check
          %p284 = pneg %p81
        $region38: #{tpu_custom_call.1} parent=35 // pred_check_branch
          %286 = sbr.rel (%p284) target = $region40
        $region39: #{tpu_custom_call.1} parent=35 // pred_region
          %s287 = smul.u32 32, %s22
          %p288 = scmp.lt.s32.totalorder %s21, 1
          %s289 = scalar_select %p288, %s21, 1
          %p290 = scmp.lt.s32.totalorder %s287, 127
          %s291 = scalar_select %p290, %s287, 127
          %s292 = smul.addr %s289, 128
          %s293 = sadd.s32 %s291, %s292
          %s294 = smul.addr %s293, 8
          %s295 = scalar_lea.vmem %s1, %s294
        $region40: #{tpu_custom_call.1} parent=35 // pred_fallthru
          _
      $region36: #{tpu_custom_call.1} parent=5 // pred_fallthru
        _
    $region6: #{tpu_custom_call.1} parent=1 // loop_footer
      %s14 = sadd.s32 1, %s10
    $region7: #{tpu_custom_call.1} parent=1 // loop_footer_branch
      %9 = sbr.rel target = $region3
    $region8: #{tpu_custom_call.1} parent=1 // loop_exit
      _
    %296 = vsyncpa [#allocation3], 1
    %s297 = scalar_lea.sflag [#allocation3], 1
    %298 = vsyncpa %s297, 1

</llo_original>
